<compile_context>
chip_gen: v7x
topology: tpu7x:2x2x1
jax: 0.10.0
libtpu: 0.0.40
codegen_flags: <defaults>
</compile_context>

<pallas_src>
import jax
import jax.numpy as jnp
from jax.experimental import pallas as pl
from jax.experimental.pallas import tpu as pltpu


# ---------------------------------------------------------------------------
# Kernels
# ---------------------------------------------------------------------------

def _lora_qkv_kernel(x_ref, w_ref, b_ref, aq_ref, av_ref, bq_ref, bv_ref, o_ref):
    """One row tile of tokens: qkv projection + rank-r LoRA on q/v slabs.

    x_ref  : (tm, C)   input dtype (cast to compute dtype on the VPU here)
    w_ref  : (C, 3C)   qkv weight, pre-transposed, compute dtype
    b_ref  : (1, 3C)   qkv bias, f32
    aq_ref : (C, r)    A_q^T        av_ref : (C, r)    A_v^T
    bq_ref : (r, C)    B_q^T        bv_ref : (r, C)    B_v^T
    o_ref  : (tm, 3C)  output dtype
    """
    C = bq_ref.shape[1]
    x = x_ref[...].astype(w_ref.dtype)        # VPU cast, hides under the MXU

    # Main projection on the MXU, f32 accumulation.
    qkv = jnp.dot(x, w_ref[...], preferred_element_type=jnp.float32)
    qkv = qkv + b_ref[...]

    # LoRA branches (rank r << C); xa_* are tiny (tm, r) f32 tiles.
    # bf16 path note: xa is rounded to bf16 before the second GEMM (one extra
    # rounding vs the f32 reference) — within the stated tolerances.
    xa_q = jnp.dot(x, aq_ref[...], preferred_element_type=jnp.float32)
    xa_v = jnp.dot(x, av_ref[...], preferred_element_type=jnp.float32)
    dq = jnp.dot(xa_q.astype(bq_ref.dtype), bq_ref[...],
                 preferred_element_type=jnp.float32)
    dv = jnp.dot(xa_v.astype(bv_ref.dtype), bv_ref[...],
                 preferred_element_type=jnp.float32)

    # f32 epilogue; the q/k/v slabs are C-wide and lane-aligned.
    o_ref[:, :C]      = (qkv[:, :C] + dq).astype(o_ref.dtype)
    o_ref[:, C:2 * C] = qkv[:, C:2 * C].astype(o_ref.dtype)
    o_ref[:, 2 * C:]  = (qkv[:, 2 * C:] + dv).astype(o_ref.dtype)


def _merged_qkv_kernel(x_ref, w_ref, b_ref, o_ref):
    """Merged path: LoRA already folded into W, single biased GEMM."""
    x = x_ref[...].astype(w_ref.dtype)
    qkv = jnp.dot(x, w_ref[...], preferred_element_type=jnp.float32)
    o_ref[...] = (qkv + b_ref[...]).astype(o_ref.dtype)


# ---------------------------------------------------------------------------
# One-time parameter preparation (keep out of the per-call hot path)
# ---------------------------------------------------------------------------

def prepare_lora_qkv_params(w_qkv, b_qkv, a_q, b_q, a_v, b_v, *,
                            compute_dtype=jnp.bfloat16, merge_lora=False):
    """Transpose / cast / (optionally) merge the weights once.

    PyTorch convention: every weight is (out_features, in_features), i.e.
      w_qkv: (3C, C)   a_q, a_v: (r, C)   b_q, b_v: (C, r).

    merge_lora=True (frozen adapters / inference): fold the LoRA products
    into the qkv weight in f32, then cast once — the kernel becomes a single
    biased GEMM (removes both small-K GEMMs, their f32 scratch and DMAs).
    """
    out_dim, C = w_qkv.shape
    assert out_dim == 3 * C, "qkv weight must be (3*dim, dim)"
    bias = jnp.asarray(b_qkv, jnp.float32).reshape(1, out_dim)

    if merge_lora:
        w_t = jnp.asarray(w_qkv, jnp.float32).T                         # (C, 3C)
        dq = jnp.asarray(a_q, jnp.float32).T @ jnp.asarray(b_q, jnp.float32).T
        dv = jnp.asarray(a_v, jnp.float32).T @ jnp.asarray(b_v, jnp.float32).T
        w_t = w_t.at[:, :C].add(dq).at[:, 2 * C:].add(dv)
        return dict(merged=True, w_t=w_t.astype(compute_dtype), bias=bias)

    return dict(
        merged=False,
        w_t=jnp.asarray(w_qkv).T.astype(compute_dtype),                 # (C, 3C)
        bias=bias,
        a_q_t=jnp.asarray(a_q).T.astype(compute_dtype),                 # (C, r)
        a_v_t=jnp.asarray(a_v).T.astype(compute_dtype),                 # (C, r)
        b_q_t=jnp.asarray(b_q).T.astype(compute_dtype),                 # (r, C)
        b_v_t=jnp.asarray(b_v).T.astype(compute_dtype),                 # (r, C)
    )


# ---------------------------------------------------------------------------
# VMEM accounting + tile selection
# ---------------------------------------------------------------------------

def _vmem_needed_bytes(tm, C, out_dim, r, in_it, cd, od, merged):
    """Kernel VMEM residency: BlockSpec buffers + in-kernel f32 scratch."""
    # Loop-invariant operands: constant block index => DMA'd once, but the
    # pipeline still allocates two buffers for them.
    inv = C * out_dim * cd + out_dim * 4
    if not merged:
        inv += 2 * C * r * cd + 2 * r * C * cd
    # Per-step row tiles (double-buffered).
    tiles = tm * C * in_it + tm * out_dim * od
    # In-kernel f32 intermediates: x cast, qkv, xa_q/xa_v, delta_q/delta_v.
    scratch = tm * C * cd + tm * out_dim * 4
    if not merged:
        scratch += 2 * tm * r * 4 + 2 * tm * C * 4
    return 2 * (inv + tiles) + scratch


def _vmem_budget_bytes():
    """Physical VMEM of this generation minus headroom (v7x: 64 MiB)."""
    try:
        cap = int(pltpu.get_tpu_info().vmem_capacity_bytes)
    except Exception:
        cap = 64 << 20          # conservative fallback (v7x-sized)
    return max(cap - (16 << 20), 24 << 20)


_TM_CANDIDATES = (1024, 768, 512, 384, 256, 128)


def _pick_tm(M, tm_req, fits):
    """Row-tile size. Priority: fits the VMEM budget; divides M (no pad copy);
    >= 4 grid steps (2 v7x TensorCores + pipelining); as large as possible.
    All candidates are multiples of 128 (256-multiples for the big ones)."""
    if M <= 128:
        return max(8, -(-M // 8) * 8)            # single tile, sublane-aligned
    cap = min(int(tm_req), M)
    cands = [t for t in _TM_CANDIDATES if t <= cap] or [128]
    fitting = [t for t in cands if fits(t)]
    if not fitting:
        return min(cands)
    return max(fitting, key=lambda t: (M % t == 0, pl.cdiv(M, t) >= 4, t))


# ---------------------------------------------------------------------------
# Wrapper
# ---------------------------------------------------------------------------

def lora_qkv(x, params, *, tm=None, out_dtype=None):
    """LoRA-augmented qkv projection.  x: (B, H, W, C) -> (B, H, W, 3C).

    out_dtype defaults to x.dtype (reference semantics).  Pass
    out_dtype=jnp.bfloat16 on HBM-writeback-bound chips (v6e) to halve the
    dominant output stream.
    """
    w_t, bias, merged = params["w_t"], params["bias"], params["merged"]
    B, H, W, C = x.shape
    out_dim = w_t.shape[1]
    r = 0 if merged else params["a_q_t"].shape[1]
    cd = jnp.dtype(w_t.dtype).itemsize
    in_it = jnp.dtype(x.dtype).itemsize
    out_dtype = x.dtype if out_dtype is None else jnp.dtype(out_dtype)
    od = jnp.dtype(out_dtype).itemsize

    M = B * H * W
    budget = _vmem_budget_bytes()

    def needed(t):
        est = _vmem_needed_bytes(t, C, out_dim, r, in_it, cd, od, merged)
        return int(est * 1.25) + (8 << 20)

    tm_req = 1024 if tm is None else tm
    tm = _pick_tm(M, tm_req, lambda t: needed(t) <= budget)
    vmem_limit = int(min(budget, max(32 << 20, needed(tm))))

    m_pad = pl.cdiv(M, tm) * tm
    x2 = x.reshape(M, C)                 # no dtype cast here: cast in-kernel
    if m_pad != M:
        # Rare fallback: tm is preferentially chosen to divide M.
        x2 = jnp.pad(x2, ((0, m_pad - M), (0, 0)))

    row_spec = pl.BlockSpec((tm, C), lambda i: (i, 0))
    out_spec = pl.BlockSpec((tm, out_dim), lambda i: (i, 0))

    def inv(shape):                       # loop-invariant operand (DMA'd once)
        return pl.BlockSpec(shape, lambda i: (0, 0))

    if merged:
        kernel = _merged_qkv_kernel
        operands = (x2, w_t, bias)
        in_specs = [row_spec, inv((C, out_dim)), inv((1, out_dim))]
    else:
        kernel = _lora_qkv_kernel
        operands = (x2, w_t, bias, params["a_q_t"], params["a_v_t"],
                    params["b_q_t"], params["b_v_t"])
        in_specs = [row_spec, inv((C, out_dim)), inv((1, out_dim)),
                    inv((C, r)), inv((C, r)), inv((r, C)), inv((r, C))]

    out = pl.pallas_call(
        kernel,
        out_shape=jax.ShapeDtypeStruct((m_pad, out_dim), out_dtype),
        grid_spec=pltpu.PrefetchScalarGridSpec(
            num_scalar_prefetch=0,
            grid=(m_pad // tm,),
            in_specs=in_specs,
            out_specs=out_spec),
        compiler_params=pltpu.CompilerParams(
            dimension_semantics=("parallel",),
            vmem_limit_bytes=vmem_limit),
    )(*operands)

    if m_pad != M:
        out = out[:M]
    return out.reshape(B, H, W, out_dim)


# ---------------------------------------------------------------------------
# Pure-JAX reference + self-test
# ---------------------------------------------------------------------------

def _reference(x, w_qkv, b_qkv, a_q, b_q, a_v, b_v):
    C = x.shape[-1]
    hp = jax.lax.Precision.HIGHEST
    qkv = jnp.einsum("bhwc,oc->bhwo", x, w_qkv, precision=hp) + b_qkv
    new_q = jnp.einsum("bhwr,or->bhwo",
                       jnp.einsum("bhwc,rc->bhwr", x, a_q, precision=hp),
                       b_q, precision=hp)
    new_v = jnp.einsum("bhwr,or->bhwo",
                       jnp.einsum("bhwc,rc->bhwr", x, a_v, precision=hp),
                       b_v, precision=hp)
    qkv = qkv.at[..., :C].add(new_q)
    qkv = qkv.at[..., -C:].add(new_v)
    return qkv


if __name__ == "__main__":
    # Small but lane-aligned setup: C=128 (one lane group), rank r=4,
    # tokens = 2*8*8 = 128.
    B, H, W, C = 2, 8, 8, 128
    r = 4

    key = jax.random.PRNGKey(0)
    kx, kw, kb, kaq, kbq, kav, kbv = jax.random.split(key, 7)

    x = jax.random.normal(kx, (B, H, W, C), jnp.float32)
    w_qkv = jax.random.normal(kw, (3 * C, C), jnp.float32) * 0.05   # (out, in)
    b_qkv = jax.random.normal(kb, (3 * C,), jnp.float32) * 0.05
    a_q = jax.random.normal(kaq, (r, C), jnp.float32) * 0.05        # LoRA A_q
    b_q = jax.random.normal(kbq, (C, r), jnp.float32) * 0.05        # LoRA B_q
    a_v = jax.random.normal(kav, (r, C), jnp.float32) * 0.05        # LoRA A_v
    b_v = jax.random.normal(kbv, (C, r), jnp.float32) * 0.05        # LoRA B_v

    ref = _reference(x, w_qkv, b_qkv, a_q, b_q, a_v, b_v)

    # 1) f32 compute path: tight tolerance.
    params_f32 = prepare_lora_qkv_params(
        w_qkv, b_qkv, a_q, b_q, a_v, b_v, compute_dtype=jnp.float32)
    out_f32 = jax.block_until_ready(lora_qkv(x, params_f32))
    assert out_f32.shape == (B, H, W, 3 * C)
    assert jnp.allclose(out_f32, ref, atol=1e-3, rtol=1e-3)

    # 2) bf16 compute path (production default on v5e/v6e/v7x).
    params_bf16 = prepare_lora_qkv_params(
        w_qkv, b_qkv, a_q, b_q, a_v, b_v, compute_dtype=jnp.bfloat16)
    out_bf16 = jax.block_until_ready(lora_qkv(x, params_bf16))
    assert out_bf16.shape == (B, H, W, 3 * C)
    assert jnp.allclose(out_bf16, ref, atol=5e-2, rtol=5e-2)

    # 3) bf16 compute + bf16 output (halves the dominant HBM write stream).
    out_bf16o = jax.block_until_ready(
        lora_qkv(x, params_bf16, out_dtype=jnp.bfloat16))
    assert out_bf16o.dtype == jnp.bfloat16
    assert jnp.allclose(out_bf16o.astype(jnp.float32), ref, atol=5e-2, rtol=5e-2)

    # 4) Merged-adapter path (frozen LoRA / serving): single biased GEMM.
    params_merged = prepare_lora_qkv_params(
        w_qkv, b_qkv, a_q, b_q, a_v, b_v,
        compute_dtype=jnp.float32, merge_lora=True)
    out_merged = jax.block_until_ready(lora_qkv(x, params_merged))
    assert jnp.allclose(out_merged, ref, atol=1e-3, rtol=1e-3)

    print("KERNEL_OK")
</pallas_src>

<mosaic_0001>
module attributes {stable_mosaic.version = 11 : i64} {
  func.func @_lora_qkv_kernel(%arg0: i32, %arg1: memref<128x128xf32, #tpu.memory_space<vmem>>, %arg2: memref<128x384xf32, #tpu.memory_space<vmem>>, %arg3: memref<1x384xf32, #tpu.memory_space<vmem>>, %arg4: memref<128x4xf32, #tpu.memory_space<vmem>>, %arg5: memref<128x4xf32, #tpu.memory_space<vmem>>, %arg6: memref<4x128xf32, #tpu.memory_space<vmem>>, %arg7: memref<4x128xf32, #tpu.memory_space<vmem>>, %arg8: memref<128x384xf32, #tpu.memory_space<vmem>>) attributes {dimension_semantics = [#tpu.dimension_semantics<parallel>], iteration_bounds = array<i64: 1>, scalar_prefetch = 0 : i64, scratch_operands = 0 : i64, tpu.core_type = #tpu.core_type<tc>, window_params = [{transform_indices = @transform_0, window_bounds = array<i64: 128, 128>}, {pipeline_mode = #tpu.pipeline_mode<synchronous>, transform_indices = @transform_1, window_bounds = array<i64: 128, 384>}, {pipeline_mode = #tpu.pipeline_mode<synchronous>, transform_indices = @transform_2, window_bounds = array<i64: 1, 384>}, {pipeline_mode = #tpu.pipeline_mode<synchronous>, transform_indices = @transform_3, window_bounds = array<i64: 128, 4>}, {pipeline_mode = #tpu.pipeline_mode<synchronous>, transform_indices = @transform_4, window_bounds = array<i64: 128, 4>}, {pipeline_mode = #tpu.pipeline_mode<synchronous>, transform_indices = @transform_5, window_bounds = array<i64: 4, 128>}, {pipeline_mode = #tpu.pipeline_mode<synchronous>, transform_indices = @transform_6, window_bounds = array<i64: 4, 128>}, {transform_indices = @transform_7, window_bounds = array<i64: 128, 384>}]} {
    %c0 = arith.constant 0 : index
    %c0_0 = arith.constant 0 : index
    %0 = vector.load %arg1[%c0, %c0_0] : memref<128x128xf32, #tpu.memory_space<vmem>>, vector<128x128xf32>
    %c0_1 = arith.constant 0 : index
    %c0_2 = arith.constant 0 : index
    %1 = vector.load %arg2[%c0_1, %c0_2] : memref<128x384xf32, #tpu.memory_space<vmem>>, vector<128x384xf32>
    %cst = arith.constant dense<0.000000e+00> : vector<128x384xf32>
    %2 = tpu.matmul %0, %1, %cst {dimension_numbers = #tpu.dot_dimension_numbers<[1], [0], [0], [1], [0, 0, 1, 1], [], []>} : vector<128x128xf32>, vector<128x384xf32>, vector<128x384xf32> -> vector<128x384xf32>
    %c0_3 = arith.constant 0 : index
    %c0_4 = arith.constant 0 : index
    %3 = vector.load %arg3[%c0_3, %c0_4] : memref<1x384xf32, #tpu.memory_space<vmem>>, vector<1x384xf32>
    %4 = vector.broadcast %3 : vector<1x384xf32> to vector<128x384xf32>
    %5 = arith.addf %2, %4 : vector<128x384xf32>
    %c0_5 = arith.constant 0 : index
    %c0_6 = arith.constant 0 : index
    %6 = vector.load %arg4[%c0_5, %c0_6] : memref<128x4xf32, #tpu.memory_space<vmem>>, vector<128x4xf32>
    %cst_7 = arith.constant dense<0.000000e+00> : vector<128x4xf32>
    %7 = tpu.matmul %0, %6, %cst_7 {dimension_numbers = #tpu.dot_dimension_numbers<[1], [0], [0], [1], [0, 0, 1, 1], [], []>} : vector<128x128xf32>, vector<128x4xf32>, vector<128x4xf32> -> vector<128x4xf32>
    %c0_8 = arith.constant 0 : index
    %c0_9 = arith.constant 0 : index
    %8 = vector.load %arg5[%c0_8, %c0_9] : memref<128x4xf32, #tpu.memory_space<vmem>>, vector<128x4xf32>
    %cst_10 = arith.constant dense<0.000000e+00> : vector<128x4xf32>
    %9 = tpu.matmul %0, %8, %cst_10 {dimension_numbers = #tpu.dot_dimension_numbers<[1], [0], [0], [1], [0, 0, 1, 1], [], []>} : vector<128x128xf32>, vector<128x4xf32>, vector<128x4xf32> -> vector<128x4xf32>
    %c0_11 = arith.constant 0 : index
    %c0_12 = arith.constant 0 : index
    %10 = vector.load %arg6[%c0_11, %c0_12] : memref<4x128xf32, #tpu.memory_space<vmem>>, vector<4x128xf32>
    %cst_13 = arith.constant dense<0.000000e+00> : vector<128x128xf32>
    %11 = tpu.matmul %7, %10, %cst_13 {dimension_numbers = #tpu.dot_dimension_numbers<[1], [0], [0], [1], [0, 0, 1, 1], [], []>} : vector<128x4xf32>, vector<4x128xf32>, vector<128x128xf32> -> vector<128x128xf32>
    %c0_14 = arith.constant 0 : index
    %c0_15 = arith.constant 0 : index
    %12 = vector.load %arg7[%c0_14, %c0_15] : memref<4x128xf32, #tpu.memory_space<vmem>>, vector<4x128xf32>
    %cst_16 = arith.constant dense<0.000000e+00> : vector<128x128xf32>
    %13 = tpu.matmul %9, %12, %cst_16 {dimension_numbers = #tpu.dot_dimension_numbers<[1], [0], [0], [1], [0, 0, 1, 1], [], []>} : vector<128x4xf32>, vector<4x128xf32>, vector<128x128xf32> -> vector<128x128xf32>
    %14 = vector.extract_strided_slice %5 {offsets = [0, 0], sizes = [128, 128], strides = [1, 1]} : vector<128x384xf32> to vector<128x128xf32>
    %15 = arith.addf %14, %11 : vector<128x128xf32>
    %c0_17 = arith.constant 0 : index
    %c0_18 = arith.constant 0 : index
    %16 = vector.load %arg8[%c0_17, %c0_18] : memref<128x384xf32, #tpu.memory_space<vmem>>, vector<128x128xf32>
    tpu.vector_store %arg8[%c0_17, %c0_18], %15 {strides = array<i32>} : memref<128x384xf32, #tpu.memory_space<vmem>>, vector<128x128xf32>,
    %17 = vector.extract_strided_slice %5 {offsets = [0, 128], sizes = [128, 128], strides = [1, 1]} : vector<128x384xf32> to vector<128x128xf32>
    %c0_19 = arith.constant 0 : index
    %c128 = arith.constant 128 : index
    %18 = vector.load %arg8[%c0_19, %c128] : memref<128x384xf32, #tpu.memory_space<vmem>>, vector<128x128xf32>
    tpu.vector_store %arg8[%c0_19, %c128], %17 {strides = array<i32>} : memref<128x384xf32, #tpu.memory_space<vmem>>, vector<128x128xf32>,
    %19 = vector.extract_strided_slice %5 {offsets = [0, 256], sizes = [128, 128], strides = [1, 1]} : vector<128x384xf32> to vector<128x128xf32>
    %20 = arith.addf %19, %13 : vector<128x128xf32>
    %c0_20 = arith.constant 0 : index
    %c256 = arith.constant 256 : index
    %21 = vector.load %arg8[%c0_20, %c256] : memref<128x384xf32, #tpu.memory_space<vmem>>, vector<128x128xf32>
    tpu.vector_store %arg8[%c0_20, %c256], %20 {strides = array<i32>} : memref<128x384xf32, #tpu.memory_space<vmem>>, vector<128x128xf32>,
    return
  }
  func.func @transform_0(%arg0: i32) -> (i32, i32) {
    %c0_i32 = arith.constant 0 : i32
    %c0_i32_0 = arith.constant 0 : i32
    return %arg0, %c0_i32 : i32, i32
  }
  func.func @transform_1(%arg0: i32) -> (i32, i32) {
    %c0_i32 = arith.constant 0 : i32
    %c0_i32_0 = arith.constant 0 : i32
    %c0_i32_1 = arith.constant 0 : i32
    return %c0_i32, %c0_i32_0 : i32, i32
  }
  func.func @transform_2(%arg0: i32) -> (i32, i32) {
    %c0_i32 = arith.constant 0 : i32
    %c0_i32_0 = arith.constant 0 : i32
    %c0_i32_1 = arith.constant 0 : i32
    return %c0_i32, %c0_i32_0 : i32, i32
  }
  func.func @transform_3(%arg0: i32) -> (i32, i32) {
    %c0_i32 = arith.constant 0 : i32
    %c0_i32_0 = arith.constant 0 : i32
    %c0_i32_1 = arith.constant 0 : i32
    return %c0_i32, %c0_i32_0 : i32, i32
  }
  func.func @transform_4(%arg0: i32) -> (i32, i32) {
    %c0_i32 = arith.constant 0 : i32
    %c0_i32_0 = arith.constant 0 : i32
    %c0_i32_1 = arith.constant 0 : i32
    return %c0_i32, %c0_i32_0 : i32, i32
  }
  func.func @transform_5(%arg0: i32) -> (i32, i32) {
    %c0_i32 = arith.constant 0 : i32
    %c0_i32_0 = arith.constant 0 : i32
    %c0_i32_1 = arith.constant 0 : i32
    return %c0_i32, %c0_i32_0 : i32, i32
  }
  func.func @transform_6(%arg0: i32) -> (i32, i32) {
    %c0_i32 = arith.constant 0 : i32
    %c0_i32_0 = arith.constant 0 : i32
    %c0_i32_1 = arith.constant 0 : i32
    return %c0_i32, %c0_i32_0 : i32, i32
  }
  func.func @transform_7(%arg0: i32) -> (i32, i32) {
    %c0_i32 = arith.constant 0 : i32
    %c0_i32_0 = arith.constant 0 : i32
    return %arg0, %c0_i32 : i32, i32
  }
}

</mosaic_0001>

<llo_original>
// kernel: tpu_custom_call.1
$region0: #{tpu_custom_call.1}
  #allocation0 [shape = 'u32[]', space=smem, size = 0x4, offset = 0x4, fixed_abs, tag = 'smem constant byte address 0x4 - core index']
  #allocation1 [shape = 'u32[144,128]{1,0:T(1,128)}', space=vmem, size = 0x12000, scoped, tag = 'internal scratch']
  %s0 = inlined_call_operand.vmem [shape: f32[128,128], index: 0, kind: input, shape index: {}]
  %s1 = inlined_call_operand.hbm [shape: f32[128,384], index: 1, kind: input, shape index: {}]
  %s2 = inlined_call_operand.vmem [shape: f32[1,384], index: 2, kind: input, shape index: {}]
  %s3 = inlined_call_operand.vmem [shape: f32[128,4], index: 3, kind: input, shape index: {}]
  %s4 = inlined_call_operand.vmem [shape: f32[128,4], index: 4, kind: input, shape index: {}]
  %s5 = inlined_call_operand.vmem [shape: f32[4,128], index: 5, kind: input, shape index: {}]
  %s6 = inlined_call_operand.vmem [shape: f32[4,128], index: 6, kind: input, shape index: {}]
  %s7 = inlined_call_operand.hbm [shape: f32[128,384], index: 7, kind: output, shape index: {}]
  %s8 = sld [smem:[#allocation0]]
  $region42: #{tpu_custom_call.1} parent=0
    _
  %s10 = ssub.s32 1, %s8
  %s11 = scalar_select 0, %s10, %s8
  $region1: #{tpu_custom_call.1} parent=0
    #allocation2 [shape = 'u8[196608]{0}', space=vmem, size = 0x30000, scoped, tag = 'input window, operand 1, single buffered']
    #allocation3 [shape = 's32[1]{0}', space=sflag, size = 0x4, scoped, tag = 'scoped memory for tpu_custom_call.1']
    #allocation4 [shape = 's32[1]{0}', space=sflag, size = 0x4, scoped, tag = 'scoped memory for tpu_custom_call.1']
    #allocation5 [shape = 'u8[196608]{0}', space=vmem, size = 0x30000, scoped, tag = 'output window, operand 0, single buffered']
    %12 = vsyncpa [#allocation3], 0
    %13 = vsyncpa [#allocation4], 0
    // Predicated region
    $region2: #{tpu_custom_call.1} parent=1 // pred_check
      _
    $region3: #{tpu_custom_call.1} parent=1 // pred_check_branch
      %15 = sbr.rel (0) target = $region5
    $region4: #{tpu_custom_call.1} parent=1 // pred_region
      _
    $region5: #{tpu_custom_call.1} parent=1 // pred_fallthru
      _
    // Predicated region
    $region6: #{tpu_custom_call.1} parent=1 // pred_check
      _
    $region7: #{tpu_custom_call.1} parent=1 // pred_check_branch
      %17 = sbr.rel (0) target = $region9
    $region8: #{tpu_custom_call.1} parent=1 // pred_region
      %s19 = ssub.s32 6144, 6144
      %20 = vsyncadd [#allocation3], %s19
      %s21 = sshll.u32 [#allocation2], 4
      %s22 = int_to_ptr.vmem [resolvable:$true] %s21
      %27 = dma.hbm_to_vmem [thread:$0]  %s1, 6144, %s22, [#allocation3], 384, 384, 24
    $region9: #{tpu_custom_call.1} parent=1 // pred_fallthru
      _
    // Predicated region
    $region10: #{tpu_custom_call.1} parent=1 // pred_check
      _
    $region11: #{tpu_custom_call.1} parent=1 // pred_check_branch
      %29 = sbr.rel (0) target = $region13
    $region12: #{tpu_custom_call.1} parent=1 // pred_region
      _
    $region13: #{tpu_custom_call.1} parent=1 // pred_fallthru
      _
    // Predicated region
    $region14: #{tpu_custom_call.1} parent=1 // pred_check
      _
    $region15: #{tpu_custom_call.1} parent=1 // pred_check_branch
      %31 = sbr.rel (0) target = $region17
    $region16: #{tpu_custom_call.1} parent=1 // pred_region
      _
    $region17: #{tpu_custom_call.1} parent=1 // pred_fallthru
      _
    // Predicated region
    $region18: #{tpu_custom_call.1} parent=1 // pred_check
      _
    $region19: #{tpu_custom_call.1} parent=1 // pred_check_branch
      %33 = sbr.rel (0) target = $region21
    $region20: #{tpu_custom_call.1} parent=1 // pred_region
      _
    $region21: #{tpu_custom_call.1} parent=1 // pred_fallthru
      _
    // Predicated region
    $region22: #{tpu_custom_call.1} parent=1 // pred_check
      _
    $region23: #{tpu_custom_call.1} parent=1 // pred_check_branch
      %35 = sbr.rel (0) target = $region25
    $region24: #{tpu_custom_call.1} parent=1 // pred_region
      _
    $region25: #{tpu_custom_call.1} parent=1 // pred_fallthru
      _
    // Predicated region
    $region26: #{tpu_custom_call.1} parent=1 // pred_check
      _
    $region27: #{tpu_custom_call.1} parent=1 // pred_check_branch
      %37 = sbr.rel (0) target = $region29
    $region28: #{tpu_custom_call.1} parent=1 // pred_region
      _
    $region29: #{tpu_custom_call.1} parent=1 // pred_fallthru
      _
    // Predicated region
    $region30: #{tpu_custom_call.1} parent=1 // pred_check
      _
    $region31: #{tpu_custom_call.1} parent=1 // pred_check_branch
      %39 = sbr.rel (0) target = $region33
    $region32: #{tpu_custom_call.1} parent=1 // pred_region
      %40 = dma.done [#allocation3], 6144
    $region33: #{tpu_custom_call.1} parent=1 // pred_fallthru
      _
    %v41 = vld [vmem:[%s0] sm:$0xff]
    %v42 = vld [vmem:[%s0 + $0x8] sm:$0xff]
    %v43 = vld [vmem:[%s0 + $0x10] sm:$0xff]
    %v44 = vld [vmem:[%s0 + $0x18] sm:$0xff]
    %v45 = vld [vmem:[%s0 + $0x20] sm:$0xff]
    %v46 = vld [vmem:[%s0 + $0x28] sm:$0xff]
    %v47 = vld [vmem:[%s0 + $0x30] sm:$0xff]
    %v48 = vld [vmem:[%s0 + $0x38] sm:$0xff]
    %v49 = vld [vmem:[%s0 + $0x40] sm:$0xff]
    %v50 = vld [vmem:[%s0 + $0x48] sm:$0xff]
    %v51 = vld [vmem:[%s0 + $0x50] sm:$0xff]
    %v52 = vld [vmem:[%s0 + $0x58] sm:$0xff]
    %v53 = vld [vmem:[%s0 + $0x60] sm:$0xff]
    %v54 = vld [vmem:[%s0 + $0x68] sm:$0xff]
    %v55 = vld [vmem:[%s0 + $0x70] sm:$0xff]
    %v56 = vld [vmem:[%s0 + $0x78] sm:$0xff]
    %v57 = vld [vmem:[#allocation2] sm:$0xff]
    %v58 = vld [vmem:[#allocation2 + $0x8] sm:$0xff]
    %v59 = vld [vmem:[#allocation2 + $0x10] sm:$0xff]
    %v60 = vld [vmem:[#allocation2 + $0x18] sm:$0xff]
    %v61 = vld [vmem:[#allocation2 + $0x20] sm:$0xff]
    %v62 = vld [vmem:[#allocation2 + $0x28] sm:$0xff]
    %v63 = vld [vmem:[#allocation2 + $0x30] sm:$0xff]
    %v64 = vld [vmem:[#allocation2 + $0x38] sm:$0xff]
    %v65 = vld [vmem:[#allocation2 + $0x40] sm:$0xff]
    %v66 = vld [vmem:[#allocation2 + $0x48] sm:$0xff]
    %v67 = vld [vmem:[#allocation2 + $0x50] sm:$0xff]
    %v68 = vld [vmem:[#allocation2 + $0x58] sm:$0xff]
    %v69 = vld [vmem:[#allocation2 + $0x60] sm:$0xff]
    %v70 = vld [vmem:[#allocation2 + $0x68] sm:$0xff]
    %v71 = vld [vmem:[#allocation2 + $0x70] sm:$0xff]
    %v72 = vld [vmem:[#allocation2 + $0x78] sm:$0xff]
    %v73 = vld [vmem:[#allocation2 + $0x80] sm:$0xff]
    %v74 = vld [vmem:[#allocation2 + $0x88] sm:$0xff]
    %v75 = vld [vmem:[#allocation2 + $0x90] sm:$0xff]
    %v76 = vld [vmem:[#allocation2 + $0x98] sm:$0xff]
    %v77 = vld [vmem:[#allocation2 + $0xa0] sm:$0xff]
    %v78 = vld [vmem:[#allocation2 + $0xa8] sm:$0xff]
    %v79 = vld [vmem:[#allocation2 + $0xb0] sm:$0xff]
    %v80 = vld [vmem:[#allocation2 + $0xb8] sm:$0xff]
    %v81 = vld [vmem:[#allocation2 + $0xc0] sm:$0xff]
    %v82 = vld [vmem:[#allocation2 + $0xc8] sm:$0xff]
    %v83 = vld [vmem:[#allocation2 + $0xd0] sm:$0xff]
    %v84 = vld [vmem:[#allocation2 + $0xd8] sm:$0xff]
    %v85 = vld [vmem:[#allocation2 + $0xe0] sm:$0xff]
    %v86 = vld [vmem:[#allocation2 + $0xe8] sm:$0xff]
    %v87 = vld [vmem:[#allocation2 + $0xf0] sm:$0xff]
    %v88 = vld [vmem:[#allocation2 + $0xf8] sm:$0xff]
    %v89 = vld [vmem:[#allocation2 + $0x100] sm:$0xff]
    %v90 = vld [vmem:[#allocation2 + $0x108] sm:$0xff]
    %v91 = vld [vmem:[#allocation2 + $0x110] sm:$0xff]
    %v92 = vld [vmem:[#allocation2 + $0x118] sm:$0xff]
    %v93 = vld [vmem:[#allocation2 + $0x120] sm:$0xff]
    %v94 = vld [vmem:[#allocation2 + $0x128] sm:$0xff]
    %v95 = vld [vmem:[#allocation2 + $0x130] sm:$0xff]
    %v96 = vld [vmem:[#allocation2 + $0x138] sm:$0xff]
    %v97 = vld [vmem:[#allocation2 + $0x140] sm:$0xff]
    %v98 = vld [vmem:[#allocation2 + $0x148] sm:$0xff]
    %v99 = vld [vmem:[#allocation2 + $0x150] sm:$0xff]
    %v100 = vld [vmem:[#allocation2 + $0x158] sm:$0xff]
    %v101 = vld [vmem:[#allocation2 + $0x160] sm:$0xff]
    %v102 = vld [vmem:[#allocation2 + $0x168] sm:$0xff]
    %v103 = vld [vmem:[#allocation2 + $0x170] sm:$0xff]
    %v104 = vld [vmem:[#allocation2 + $0x178] sm:$0xff]
    %v105 = vld [vmem:[%s2] sm:$0x7]
    %v107 = vlaneseq
    %v108 = vshrl.u32 %v107, 7
    %v109 = vsub.s32 0, %v108
    %v110 = vrot.slane %v105, %v109
    %v111 = vlaneseq
    %v112 = vshrl.u32 %v111, 7
    %v113 = vsub.s32 1, %v112
    %v114 = vrot.slane %v105, %v113
    %v115 = vlaneseq
    %v116 = vshrl.u32 %v115, 7
    %v117 = vsub.s32 2, %v116
    %v118 = vrot.slane %v105, %v117
    %122 = vmatprep.subr.mxu0 %v58
    %123 = vmatpush1.msra.mxu0 %v57
    %124 = vmatprep.subr.mxu0 %v61
    %125 = vmatpush1.msra.mxu0 %v60
    %126 = vmatprep.subr.mxu0 %v64
    %127 = vmatpush1.msra.mxu0 %v63
    %128 = vmatprep.subr.mxu0 %v67
    %129 = vmatpush1.msra.mxu0 %v66
    %130 = vmatprep.subr.mxu0 %v70
    %131 = vmatpush1.msra.mxu0 %v69
    %132 = vmatprep.subr.mxu0 %v73
    %133 = vmatpush1.msra.mxu0 %v72
    %134 = vmatprep.subr.mxu0 %v76
    %135 = vmatpush1.msra.mxu0 %v75
    %136 = vmatprep.subr.mxu0 %v79
    %137 = vmatpush1.msra.mxu0 %v78
    %138 = vmatprep.subr.mxu0 %v82
    %139 = vmatpush1.msra.mxu0 %v81
    %140 = vmatprep.subr.mxu0 %v85
    %141 = vmatpush1.msra.mxu0 %v84
    %142 = vmatprep.subr.mxu0 %v88
    %143 = vmatpush1.msra.mxu0 %v87
    %144 = vmatprep.subr.mxu0 %v91
    %145 = vmatpush1.msra.mxu0 %v90
    %146 = vmatprep.subr.mxu0 %v94
    %147 = vmatpush1.msra.mxu0 %v93
    %148 = vmatprep.subr.mxu0 %v97
    %149 = vmatpush1.msra.mxu0 %v96
    %150 = vmatprep.subr.mxu0 %v100
    %151 = vmatpush1.msra.mxu0 %v99
    %152 = vmatprep.subr.mxu0 %v103
    %153 = vmatpush1.msra.mxu0 %v102
    %154 = vmatprep.subr.mxu0 0.0
    %155 = vmatpush1.msra.mxu0 0.0
    %156 = vmatprep.subr.mxu0 0.0
    %157 = vmatpush1.msra.mxu0 0.0
    %158 = vmatprep.subr.mxu0 0.0
    %159 = vmatpush1.msra.mxu0 0.0
    %160 = vmatprep.subr.mxu0 0.0
    %161 = vmatpush1.msra.mxu0 0.0
    %162 = vmatprep.subr.mxu0 0.0
    %163 = vmatpush1.msra.mxu0 0.0
    %164 = vmatprep.subr.mxu0 0.0
    %165 = vmatpush1.msra.mxu0 0.0
    %166 = vmatprep.subr.mxu0 0.0
    %167 = vmatpush1.msra.mxu0 0.0
    %168 = vmatprep.subr.mxu0 0.0
    %169 = vmatpush1.msra.mxu0 0.0
    %170 = vmatprep.subr.mxu0 0.0
    %171 = vmatpush1.msra.mxu0 0.0
    %172 = vmatprep.subr.mxu0 0.0
    %173 = vmatpush1.msra.mxu0 0.0
    %174 = vmatprep.subr.mxu0 0.0
    %175 = vmatpush1.msra.mxu0 0.0
    %176 = vmatprep.subr.mxu0 0.0
    %177 = vmatpush1.msra.mxu0 0.0
    %178 = vmatprep.subr.mxu0 0.0
    %179 = vmatpush1.msra.mxu0 0.0
    %180 = vmatprep.subr.mxu0 0.0
    %181 = vmatpush1.msra.mxu0 0.0
    %182 = vmatprep.subr.mxu0 0.0
    %183 = vmatpush1.msra.mxu0 0.0
    %184 = vmatprep.subr.mxu0 0.0
    %185 = vmatpush1.msra.mxu0 0.0
    %186 = vmatprep.mubr.f32.mxu0 0.0
    %187 = vmatmul.mubr.f32.gmra.mrb[0].mxu0 %v41
    %v188 = vpop.f32.mrb[0].mxu0
    %v189 = vadd.f32 %v110, %v188
    %v190 = vpop.f32.mrb[0].mxu0
    %v191 = vadd.f32 %v114, %v190
    %192 = vmatprep.mubr.f32.mxu0 0.0
    %193 = vmatmul.mubr.f32.gmra.mrb[0].mxu0 %v42
    %v194 = vpop.f32.mrb[0].mxu0
    %v195 = vadd.f32 %v110, %v194
    %v196 = vpop.f32.mrb[0].mxu0
    %v197 = vadd.f32 %v114, %v196
    %198 = vmatprep.mubr.f32.mxu0 0.0
    %199 = vmatmul.mubr.f32.gmra.mrb[0].mxu0 %v43
    %v200 = vpop.f32.mrb[0].mxu0
    %v201 = vadd.f32 %v110, %v200
    %v202 = vpop.f32.mrb[0].mxu0
    %v203 = vadd.f32 %v114, %v202
    %204 = vmatprep.mubr.f32.mxu0 0.0
    %205 = vmatmul.mubr.f32.gmra.mrb[0].mxu0 %v44
    %v206 = vpop.f32.mrb[0].mxu0
    %v207 = vadd.f32 %v110, %v206
    %v208 = vpop.f32.mrb[0].mxu0
    %v209 = vadd.f32 %v114, %v208
    %210 = vmatprep.mubr.f32.mxu0 0.0
    %211 = vmatmul.mubr.f32.gmra.mrb[0].mxu0 %v45
    %v212 = vpop.f32.mrb[0].mxu0
    %v213 = vadd.f32 %v110, %v212
    %v214 = vpop.f32.mrb[0].mxu0
    %v215 = vadd.f32 %v114, %v214
    %216 = vmatprep.mubr.f32.mxu0 0.0
    %217 = vmatmul.mubr.f32.gmra.mrb[0].mxu0 %v46
    %v218 = vpop.f32.mrb[0].mxu0
    %v219 = vadd.f32 %v110, %v218
    %v220 = vpop.f32.mrb[0].mxu0
    %v221 = vadd.f32 %v114, %v220
    %222 = vmatprep.mubr.f32.mxu0 0.0
    %223 = vmatmul.mubr.f32.gmra.mrb[0].mxu0 %v47
    %v224 = vpop.f32.mrb[0].mxu0
    %v225 = vadd.f32 %v110, %v224
    %v226 = vpop.f32.mrb[0].mxu0
    %v227 = vadd.f32 %v114, %v226
    %228 = vmatprep.mubr.f32.mxu0 0.0
    %229 = vmatmul.mubr.f32.gmra.mrb[0].mxu0 %v48
    %v230 = vpop.f32.mrb[0].mxu0
    %v231 = vadd.f32 %v110, %v230
    %v232 = vpop.f32.mrb[0].mxu0
    %v233 = vadd.f32 %v114, %v232
    %234 = vmatprep.mubr.f32.mxu0 0.0
    %235 = vmatmul.mubr.f32.gmra.mrb[0].mxu0 %v49
    %v236 = vpop.f32.mrb[0].mxu0
    %v237 = vadd.f32 %v110, %v236
    %v238 = vpop.f32.mrb[0].mxu0
    %v239 = vadd.f32 %v114, %v238
    %240 = vmatprep.mubr.f32.mxu0 0.0
    %241 = vmatmul.mubr.f32.gmra.mrb[0].mxu0 %v50
    %v242 = vpop.f32.mrb[0].mxu0
    %v243 = vadd.f32 %v110, %v242
    %v244 = vpop.f32.mrb[0].mxu0
    %v245 = vadd.f32 %v114, %v244
    %246 = vmatprep.mubr.f32.mxu0 0.0
    %247 = vmatmul.mubr.f32.gmra.mrb[0].mxu0 %v51
    %v248 = vpop.f32.mrb[0].mxu0
    %v249 = vadd.f32 %v110, %v248
    %v250 = vpop.f32.mrb[0].mxu0
    %v251 = vadd.f32 %v114, %v250
    %252 = vmatprep.mubr.f32.mxu0 0.0
    %253 = vmatmul.mubr.f32.gmra.mrb[0].mxu0 %v52
    %v254 = vpop.f32.mrb[0].mxu0
    %v255 = vadd.f32 %v110, %v254
    %v256 = vpop.f32.mrb[0].mxu0
    %v257 = vadd.f32 %v114, %v256
    %258 = vmatprep.mubr.f32.mxu0 0.0
    %259 = vmatmul.mubr.f32.gmra.mrb[0].mxu0 %v53
    %v260 = vpop.f32.mrb[0].mxu0
    %v261 = vadd.f32 %v110, %v260
    %v262 = vpop.f32.mrb[0].mxu0
    %v263 = vadd.f32 %v114, %v262
    %264 = vmatprep.mubr.f32.mxu0 0.0
    %265 = vmatmul.mubr.f32.gmra.mrb[0].mxu0 %v54
    %v266 = vpop.f32.mrb[0].mxu0
    %v267 = vadd.f32 %v110, %v266
    %v268 = vpop.f32.mrb[0].mxu0
    %v269 = vadd.f32 %v114, %v268
    %270 = vmatprep.mubr.f32.mxu0 0.0
    %271 = vmatmul.mubr.f32.gmra.mrb[0].mxu0 %v55
    %v272 = vpop.f32.mrb[0].mxu0
    %v273 = vadd.f32 %v110, %v272
    %v274 = vpop.f32.mrb[0].mxu0
    %v275 = vadd.f32 %v114, %v274
    %276 = vmatprep.mubr.f32.mxu0 0.0
    %277 = vmatmul.mubr.f32.gmra.mrb[0].mxu0 %v56
    %v278 = vpop.f32.mrb[0].mxu0
    %v279 = vadd.f32 %v110, %v278
    %v280 = vpop.f32.mrb[0].mxu0
    %v281 = vadd.f32 %v114, %v280
    %282 = vdwg.mxu0
    %283 = vmatprep.subr.mxu0 0.0
    %284 = vmatpush1.msra.mxu0 %v59
    %285 = vmatprep.subr.mxu0 0.0
    %286 = vmatpush1.msra.mxu0 %v62
    %287 = vmatprep.subr.mxu0 0.0
    %288 = vmatpush1.msra.mxu0 %v65
    %289 = vmatprep.subr.mxu0 0.0
    %290 = vmatpush1.msra.mxu0 %v68
    %291 = vmatprep.subr.mxu0 0.0
    %292 = vmatpush1.msra.mxu0 %v71
    %293 = vmatprep.subr.mxu0 0.0
    %294 = vmatpush1.msra.mxu0 %v74
    %295 = vmatprep.subr.mxu0 0.0
    %296 = vmatpush1.msra.mxu0 %v77
    %297 = vmatprep.subr.mxu0 0.0
    %298 = vmatpush1.msra.mxu0 %v80
    %299 = vmatprep.subr.mxu0 0.0
    %300 = vmatpush1.msra.mxu0 %v83
    %301 = vmatprep.subr.mxu0 0.0
    %302 = vmatpush1.msra.mxu0 %v86
    %303 = vmatprep.subr.mxu0 0.0
    %304 = vmatpush1.msra.mxu0 %v89
    %305 = vmatprep.subr.mxu0 0.0
    %306 = vmatpush1.msra.mxu0 %v92
    %307 = vmatprep.subr.mxu0 0.0
    %308 = vmatpush1.msra.mxu0 %v95
    %309 = vmatprep.subr.mxu0 0.0
    %310 = vmatpush1.msra.mxu0 %v98
    %311 = vmatprep.subr.mxu0 0.0
    %312 = vmatpush1.msra.mxu0 %v101
    %313 = vmatprep.subr.mxu0 0.0
    %314 = vmatpush1.msra.mxu0 %v104
    %315 = vmatprep.subr.mxu0 0.0
    %316 = vmatpush1.msra.mxu0 0.0
    %317 = vmatprep.subr.mxu0 0.0
    %318 = vmatpush1.msra.mxu0 0.0
    %319 = vmatprep.subr.mxu0 0.0
    %320 = vmatpush1.msra.mxu0 0.0
    %321 = vmatprep.subr.mxu0 0.0
    %322 = vmatpush1.msra.mxu0 0.0
    %323 = vmatprep.subr.mxu0 0.0
    %324 = vmatpush1.msra.mxu0 0.0
    %325 = vmatprep.subr.mxu0 0.0
    %326 = vmatpush1.msra.mxu0 0.0
    %327 = vmatprep.subr.mxu0 0.0
    %328 = vmatpush1.msra.mxu0 0.0
    %329 = vmatprep.subr.mxu0 0.0
    %330 = vmatpush1.msra.mxu0 0.0
    %331 = vmatprep.subr.mxu0 0.0
    %332 = vmatpush1.msra.mxu0 0.0
    %333 = vmatprep.subr.mxu0 0.0
    %334 = vmatpush1.msra.mxu0 0.0
    %335 = vmatprep.subr.mxu0 0.0
    %336 = vmatpush1.msra.mxu0 0.0
    %337 = vmatprep.subr.mxu0 0.0
    %338 = vmatpush1.msra.mxu0 0.0
    %339 = vmatprep.subr.mxu0 0.0
    %340 = vmatpush1.msra.mxu0 0.0
    %341 = vmatprep.subr.mxu0 0.0
    %342 = vmatpush1.msra.mxu0 0.0
    %343 = vmatprep.subr.mxu0 0.0
    %344 = vmatpush1.msra.mxu0 0.0
    %345 = vmatprep.subr.mxu0 0.0
    %346 = vmatpush1.msra.mxu0 0.0
    %347 = vmatprep.mubr.f32.mxu0 0.0
    %348 = vmatmul.mubr.f32.gmra.mrb[0].mxu0 %v41
    %v349 = vpop.f32.mrb[0].mxu0
    %v350 = vadd.f32 %v118, %v349
    %v351 = vpop.f32.mrb[0].mxu0
    %352 = vmatprep.mubr.f32.mxu0 0.0
    %353 = vmatmul.mubr.f32.gmra.mrb[0].mxu0 %v42
    %v354 = vpop.f32.mrb[0].mxu0
    %v355 = vadd.f32 %v118, %v354
    %v356 = vpop.f32.mrb[0].mxu0
    %357 = vmatprep.mubr.f32.mxu0 0.0
    %358 = vmatmul.mubr.f32.gmra.mrb[0].mxu0 %v43
    %v359 = vpop.f32.mrb[0].mxu0
    %v360 = vadd.f32 %v118, %v359
    %v361 = vpop.f32.mrb[0].mxu0
    %362 = vmatprep.mubr.f32.mxu0 0.0
    %363 = vmatmul.mubr.f32.gmra.mrb[0].mxu0 %v44
    %v364 = vpop.f32.mrb[0].mxu0
    %v365 = vadd.f32 %v118, %v364
    %v366 = vpop.f32.mrb[0].mxu0
    %367 = vmatprep.mubr.f32.mxu0 0.0
    %368 = vmatmul.mubr.f32.gmra.mrb[0].mxu0 %v45
    %v369 = vpop.f32.mrb[0].mxu0
    %v370 = vadd.f32 %v118, %v369
    %v371 = vpop.f32.mrb[0].mxu0
    %372 = vmatprep.mubr.f32.mxu0 0.0
    %373 = vmatmul.mubr.f32.gmra.mrb[0].mxu0 %v46
    %v374 = vpop.f32.mrb[0].mxu0
    %v375 = vadd.f32 %v118, %v374
    %v376 = vpop.f32.mrb[0].mxu0
    %377 = vmatprep.mubr.f32.mxu0 0.0
    %378 = vmatmul.mubr.f32.gmra.mrb[0].mxu0 %v47
    %v379 = vpop.f32.mrb[0].mxu0
    %v380 = vadd.f32 %v118, %v379
    %v381 = vpop.f32.mrb[0].mxu0
    %382 = vmatprep.mubr.f32.mxu0 0.0
    %383 = vmatmul.mubr.f32.gmra.mrb[0].mxu0 %v48
    %v384 = vpop.f32.mrb[0].mxu0
    %v385 = vadd.f32 %v118, %v384
    %v386 = vpop.f32.mrb[0].mxu0
    %387 = vmatprep.mubr.f32.mxu0 0.0
    %388 = vmatmul.mubr.f32.gmra.mrb[0].mxu0 %v49
    %v389 = vpop.f32.mrb[0].mxu0
    %v390 = vadd.f32 %v118, %v389
    %v391 = vpop.f32.mrb[0].mxu0
    %392 = vmatprep.mubr.f32.mxu0 0.0
    %393 = vmatmul.mubr.f32.gmra.mrb[0].mxu0 %v50
    %v394 = vpop.f32.mrb[0].mxu0
    %v395 = vadd.f32 %v118, %v394
    %v396 = vpop.f32.mrb[0].mxu0
    %397 = vmatprep.mubr.f32.mxu0 0.0
    %398 = vmatmul.mubr.f32.gmra.mrb[0].mxu0 %v51
    %v399 = vpop.f32.mrb[0].mxu0
    %v400 = vadd.f32 %v118, %v399
    %v401 = vpop.f32.mrb[0].mxu0
    %402 = vmatprep.mubr.f32.mxu0 0.0
    %403 = vmatmul.mubr.f32.gmra.mrb[0].mxu0 %v52
    %v404 = vpop.f32.mrb[0].mxu0
    %v405 = vadd.f32 %v118, %v404
    %v406 = vpop.f32.mrb[0].mxu0
    %407 = vmatprep.mubr.f32.mxu0 0.0
    %408 = vmatmul.mubr.f32.gmra.mrb[0].mxu0 %v53
    %v409 = vpop.f32.mrb[0].mxu0
    %v410 = vadd.f32 %v118, %v409
    %v411 = vpop.f32.mrb[0].mxu0
    %412 = vmatprep.mubr.f32.mxu0 0.0
    %413 = vmatmul.mubr.f32.gmra.mrb[0].mxu0 %v54
    %v414 = vpop.f32.mrb[0].mxu0
    %v415 = vadd.f32 %v118, %v414
    %v416 = vpop.f32.mrb[0].mxu0
    %417 = vmatprep.mubr.f32.mxu0 0.0
    %418 = vmatmul.mubr.f32.gmra.mrb[0].mxu0 %v55
    %v419 = vpop.f32.mrb[0].mxu0
    %v420 = vadd.f32 %v118, %v419
    %v421 = vpop.f32.mrb[0].mxu0
    %422 = vmatprep.mubr.f32.mxu0 0.0
    %423 = vmatmul.mubr.f32.gmra.mrb[0].mxu0 %v56
    %v424 = vpop.f32.mrb[0].mxu0
    %v425 = vadd.f32 %v118, %v424
    %v426 = vpop.f32.mrb[0].mxu0
    %427 = vdwg.mxu0
    %v428 = vld [vmem:[%s3] sm:$0xff]
    %v429 = vld [vmem:[%s3 + $0x8] sm:$0xff]
    %v430 = vld [vmem:[%s3 + $0x10] sm:$0xff]
    %v431 = vld [vmem:[%s3 + $0x18] sm:$0xff]
    %v432 = vld [vmem:[%s3 + $0x20] sm:$0xff]
    %v433 = vld [vmem:[%s3 + $0x28] sm:$0xff]
    %v434 = vld [vmem:[%s3 + $0x30] sm:$0xff]
    %v435 = vld [vmem:[%s3 + $0x38] sm:$0xff]
    %v436 = vld [vmem:[%s3 + $0x40] sm:$0xff]
    %v437 = vld [vmem:[%s3 + $0x48] sm:$0xff]
    %v438 = vld [vmem:[%s3 + $0x50] sm:$0xff]
    %v439 = vld [vmem:[%s3 + $0x58] sm:$0xff]
    %v440 = vld [vmem:[%s3 + $0x60] sm:$0xff]
    %v441 = vld [vmem:[%s3 + $0x68] sm:$0xff]
    %v442 = vld [vmem:[%s3 + $0x70] sm:$0xff]
    %v443 = vld [vmem:[%s3 + $0x78] sm:$0xff]
    %444 = vmatprep.subr.mxu0 0.0
    %445 = vmatpush1.msra.mxu0 %v428
    %446 = vmatprep.subr.mxu0 0.0
    %447 = vmatpush1.msra.mxu0 %v429
    %448 = vmatprep.subr.mxu0 0.0
    %449 = vmatpush1.msra.mxu0 %v430
    %450 = vmatprep.subr.mxu0 0.0
    %451 = vmatpush1.msra.mxu0 %v431
    %452 = vmatprep.subr.mxu0 0.0
    %453 = vmatpush1.msra.mxu0 %v432
    %454 = vmatprep.subr.mxu0 0.0
    %455 = vmatpush1.msra.mxu0 %v433
    %456 = vmatprep.subr.mxu0 0.0
    %457 = vmatpush1.msra.mxu0 %v434
    %458 = vmatprep.subr.mxu0 0.0
    %459 = vmatpush1.msra.mxu0 %v435
    %460 = vmatprep.subr.mxu0 0.0
    %461 = vmatpush1.msra.mxu0 %v436
    %462 = vmatprep.subr.mxu0 0.0
    %463 = vmatpush1.msra.mxu0 %v437
    %464 = vmatprep.subr.mxu0 0.0
    %465 = vmatpush1.msra.mxu0 %v438
    %466 = vmatprep.subr.mxu0 0.0
    %467 = vmatpush1.msra.mxu0 %v439
    %468 = vmatprep.subr.mxu0 0.0
    %469 = vmatpush1.msra.mxu0 %v440
    %470 = vmatprep.subr.mxu0 0.0
    %471 = vmatpush1.msra.mxu0 %v441
    %472 = vmatprep.subr.mxu0 0.0
    %473 = vmatpush1.msra.mxu0 %v442
    %474 = vmatprep.subr.mxu0 0.0
    %475 = vmatpush1.msra.mxu0 %v443
    %476 = vmatprep.subr.mxu0 0.0
    %477 = vmatpush1.msra.mxu0 0.0
    %478 = vmatprep.subr.mxu0 0.0
    %479 = vmatpush1.msra.mxu0 0.0
    %480 = vmatprep.subr.mxu0 0.0
    %481 = vmatpush1.msra.mxu0 0.0
    %482 = vmatprep.subr.mxu0 0.0
    %483 = vmatpush1.msra.mxu0 0.0
    %484 = vmatprep.subr.mxu0 0.0
    %485 = vmatpush1.msra.mxu0 0.0
    %486 = vmatprep.subr.mxu0 0.0
    %487 = vmatpush1.msra.mxu0 0.0
    %488 = vmatprep.subr.mxu0 0.0
    %489 = vmatpush1.msra.mxu0 0.0
    %490 = vmatprep.subr.mxu0 0.0
    %491 = vmatpush1.msra.mxu0 0.0
    %492 = vmatprep.subr.mxu0 0.0
    %493 = vmatpush1.msra.mxu0 0.0
    %494 = vmatprep.subr.mxu0 0.0
    %495 = vmatpush1.msra.mxu0 0.0
    %496 = vmatprep.subr.mxu0 0.0
    %497 = vmatpush1.msra.mxu0 0.0
    %498 = vmatprep.subr.mxu0 0.0
    %499 = vmatpush1.msra.mxu0 0.0
    %500 = vmatprep.subr.mxu0 0.0
    %501 = vmatpush1.msra.mxu0 0.0
    %502 = vmatprep.subr.mxu0 0.0
    %503 = vmatpush1.msra.mxu0 0.0
    %504 = vmatprep.subr.mxu0 0.0
    %505 = vmatpush1.msra.mxu0 0.0
    %506 = vmatprep.subr.mxu0 0.0
    %507 = vmatpush1.msra.mxu0 0.0
    %508 = vmatprep.mubr.f32.mxu0 0.0
    %509 = vmatmul.mubr.f32.gmra.mrb[0].mxu0 %v41
    %v510 = vpop.f32.mrb[0].mxu0
    %v511 = vadd.f32 0.0, %v510
    %v512 = vpop.f32.mrb[0].mxu0
    %513 = vmatprep.mubr.f32.mxu0 0.0
    %514 = vmatmul.mubr.f32.gmra.mrb[0].mxu0 %v42
    %v515 = vpop.f32.mrb[0].mxu0
    %v516 = vadd.f32 0.0, %v515
    %v517 = vpop.f32.mrb[0].mxu0
    %518 = vmatprep.mubr.f32.mxu0 0.0
    %519 = vmatmul.mubr.f32.gmra.mrb[0].mxu0 %v43
    %v520 = vpop.f32.mrb[0].mxu0
    %v521 = vadd.f32 0.0, %v520
    %v522 = vpop.f32.mrb[0].mxu0
    %523 = vmatprep.mubr.f32.mxu0 0.0
    %524 = vmatmul.mubr.f32.gmra.mrb[0].mxu0 %v44
    %v525 = vpop.f32.mrb[0].mxu0
    %v526 = vadd.f32 0.0, %v525
    %v527 = vpop.f32.mrb[0].mxu0
    %528 = vmatprep.mubr.f32.mxu0 0.0
    %529 = vmatmul.mubr.f32.gmra.mrb[0].mxu0 %v45
    %v530 = vpop.f32.mrb[0].mxu0
    %v531 = vadd.f32 0.0, %v530
    %v532 = vpop.f32.mrb[0].mxu0
    %533 = vmatprep.mubr.f32.mxu0 0.0
    %534 = vmatmul.mubr.f32.gmra.mrb[0].mxu0 %v46
    %v535 = vpop.f32.mrb[0].mxu0
    %v536 = vadd.f32 0.0, %v535
    %v537 = vpop.f32.mrb[0].mxu0
    %538 = vmatprep.mubr.f32.mxu0 0.0
    %539 = vmatmul.mubr.f32.gmra.mrb[0].mxu0 %v47
    %v540 = vpop.f32.mrb[0].mxu0
    %v541 = vadd.f32 0.0, %v540
    %v542 = vpop.f32.mrb[0].mxu0
    %543 = vmatprep.mubr.f32.mxu0 0.0
    %544 = vmatmul.mubr.f32.gmra.mrb[0].mxu0 %v48
    %v545 = vpop.f32.mrb[0].mxu0
    %v546 = vadd.f32 0.0, %v545
    %v547 = vpop.f32.mrb[0].mxu0
    %548 = vmatprep.mubr.f32.mxu0 0.0
    %549 = vmatmul.mubr.f32.gmra.mrb[0].mxu0 %v49
    %v550 = vpop.f32.mrb[0].mxu0
    %v551 = vadd.f32 0.0, %v550
    %v552 = vpop.f32.mrb[0].mxu0
    %553 = vmatprep.mubr.f32.mxu0 0.0
    %554 = vmatmul.mubr.f32.gmra.mrb[0].mxu0 %v50
    %v555 = vpop.f32.mrb[0].mxu0
    %v556 = vadd.f32 0.0, %v555
    %v557 = vpop.f32.mrb[0].mxu0
    %558 = vmatprep.mubr.f32.mxu0 0.0
    %559 = vmatmul.mubr.f32.gmra.mrb[0].mxu0 %v51
    %v560 = vpop.f32.mrb[0].mxu0
    %v561 = vadd.f32 0.0, %v560
    %v562 = vpop.f32.mrb[0].mxu0
    %563 = vmatprep.mubr.f32.mxu0 0.0
    %564 = vmatmul.mubr.f32.gmra.mrb[0].mxu0 %v52
    %v565 = vpop.f32.mrb[0].mxu0
    %v566 = vadd.f32 0.0, %v565
    %v567 = vpop.f32.mrb[0].mxu0
    %568 = vmatprep.mubr.f32.mxu0 0.0
    %569 = vmatmul.mubr.f32.gmra.mrb[0].mxu0 %v53
    %v570 = vpop.f32.mrb[0].mxu0
    %v571 = vadd.f32 0.0, %v570
    %v572 = vpop.f32.mrb[0].mxu0
    %573 = vmatprep.mubr.f32.mxu0 0.0
    %574 = vmatmul.mubr.f32.gmra.mrb[0].mxu0 %v54
    %v575 = vpop.f32.mrb[0].mxu0
    %v576 = vadd.f32 0.0, %v575
    %v577 = vpop.f32.mrb[0].mxu0
    %578 = vmatprep.mubr.f32.mxu0 0.0
    %579 = vmatmul.mubr.f32.gmra.mrb[0].mxu0 %v55
    %v580 = vpop.f32.mrb[0].mxu0
    %v581 = vadd.f32 0.0, %v580
    %v582 = vpop.f32.mrb[0].mxu0
    %583 = vmatprep.mubr.f32.mxu0 0.0
    %584 = vmatmul.mubr.f32.gmra.mrb[0].mxu0 %v56
    %v585 = vpop.f32.mrb[0].mxu0
    %v586 = vadd.f32 0.0, %v585
    %v587 = vpop.f32.mrb[0].mxu0
    %588 = vdwg.mxu0
    %v589 = vld [vmem:[%s4] sm:$0xff]
    %v590 = vld [vmem:[%s4 + $0x8] sm:$0xff]
    %v591 = vld [vmem:[%s4 + $0x10] sm:$0xff]
    %v592 = vld [vmem:[%s4 + $0x18] sm:$0xff]
    %v593 = vld [vmem:[%s4 + $0x20] sm:$0xff]
    %v594 = vld [vmem:[%s4 + $0x28] sm:$0xff]
    %v595 = vld [vmem:[%s4 + $0x30] sm:$0xff]
    %v596 = vld [vmem:[%s4 + $0x38] sm:$0xff]
    %v597 = vld [vmem:[%s4 + $0x40] sm:$0xff]
    %v598 = vld [vmem:[%s4 + $0x48] sm:$0xff]
    %v599 = vld [vmem:[%s4 + $0x50] sm:$0xff]
    %v600 = vld [vmem:[%s4 + $0x58] sm:$0xff]
    %v601 = vld [vmem:[%s4 + $0x60] sm:$0xff]
    %v602 = vld [vmem:[%s4 + $0x68] sm:$0xff]
    %v603 = vld [vmem:[%s4 + $0x70] sm:$0xff]
    %v604 = vld [vmem:[%s4 + $0x78] sm:$0xff]
    %605 = vmatprep.subr.mxu0 0.0
    %606 = vmatpush1.msra.mxu0 %v589
    %607 = vmatprep.subr.mxu0 0.0
    %608 = vmatpush1.msra.mxu0 %v590
    %609 = vmatprep.subr.mxu0 0.0
    %610 = vmatpush1.msra.mxu0 %v591
    %611 = vmatprep.subr.mxu0 0.0
    %612 = vmatpush1.msra.mxu0 %v592
    %613 = vmatprep.subr.mxu0 0.0
    %614 = vmatpush1.msra.mxu0 %v593
    %615 = vmatprep.subr.mxu0 0.0
    %616 = vmatpush1.msra.mxu0 %v594
    %617 = vmatprep.subr.mxu0 0.0
    %618 = vmatpush1.msra.mxu0 %v595
    %619 = vmatprep.subr.mxu0 0.0
    %620 = vmatpush1.msra.mxu0 %v596
    %621 = vmatprep.subr.mxu0 0.0
    %622 = vmatpush1.msra.mxu0 %v597
    %623 = vmatprep.subr.mxu0 0.0
    %624 = vmatpush1.msra.mxu0 %v598
    %625 = vmatprep.subr.mxu0 0.0
    %626 = vmatpush1.msra.mxu0 %v599
    %627 = vmatprep.subr.mxu0 0.0
    %628 = vmatpush1.msra.mxu0 %v600
    %629 = vmatprep.subr.mxu0 0.0
    %630 = vmatpush1.msra.mxu0 %v601
    %631 = vmatprep.subr.mxu0 0.0
    %632 = vmatpush1.msra.mxu0 %v602
    %633 = vmatprep.subr.mxu0 0.0
    %634 = vmatpush1.msra.mxu0 %v603
    %635 = vmatprep.subr.mxu0 0.0
    %636 = vmatpush1.msra.mxu0 %v604
    %637 = vmatprep.subr.mxu0 0.0
    %638 = vmatpush1.msra.mxu0 0.0
    %639 = vmatprep.subr.mxu0 0.0
    %640 = vmatpush1.msra.mxu0 0.0
    %641 = vmatprep.subr.mxu0 0.0
    %642 = vmatpush1.msra.mxu0 0.0
    %643 = vmatprep.subr.mxu0 0.0
    %644 = vmatpush1.msra.mxu0 0.0
    %645 = vmatprep.subr.mxu0 0.0
    %646 = vmatpush1.msra.mxu0 0.0
    %647 = vmatprep.subr.mxu0 0.0
    %648 = vmatpush1.msra.mxu0 0.0
    %649 = vmatprep.subr.mxu0 0.0
    %650 = vmatpush1.msra.mxu0 0.0
    %651 = vmatprep.subr.mxu0 0.0
    %652 = vmatpush1.msra.mxu0 0.0
    %653 = vmatprep.subr.mxu0 0.0
    %654 = vmatpush1.msra.mxu0 0.0
    %655 = vmatprep.subr.mxu0 0.0
    %656 = vmatpush1.msra.mxu0 0.0
    %657 = vmatprep.subr.mxu0 0.0
    %658 = vmatpush1.msra.mxu0 0.0
    %659 = vmatprep.subr.mxu0 0.0
    %660 = vmatpush1.msra.mxu0 0.0
    %661 = vmatprep.subr.mxu0 0.0
    %662 = vmatpush1.msra.mxu0 0.0
    %663 = vmatprep.subr.mxu0 0.0
    %664 = vmatpush1.msra.mxu0 0.0
    %665 = vmatprep.subr.mxu0 0.0
    %666 = vmatpush1.msra.mxu0 0.0
    %667 = vmatprep.subr.mxu0 0.0
    %668 = vmatpush1.msra.mxu0 0.0
    %669 = vmatprep.mubr.f32.mxu0 0.0
    %670 = vmatmul.mubr.f32.gmra.mrb[0].mxu0 %v41
    %v671 = vpop.f32.mrb[0].mxu0
    %v672 = vadd.f32 0.0, %v671
    %v673 = vpop.f32.mrb[0].mxu0
    %674 = vmatprep.mubr.f32.mxu0 0.0
    %675 = vmatmul.mubr.f32.gmra.mrb[0].mxu0 %v42
    %v676 = vpop.f32.mrb[0].mxu0
    %v677 = vadd.f32 0.0, %v676
    %v678 = vpop.f32.mrb[0].mxu0
    %679 = vmatprep.mubr.f32.mxu0 0.0
    %680 = vmatmul.mubr.f32.gmra.mrb[0].mxu0 %v43
    %v681 = vpop.f32.mrb[0].mxu0
    %v682 = vadd.f32 0.0, %v681
    %v683 = vpop.f32.mrb[0].mxu0
    %684 = vmatprep.mubr.f32.mxu0 0.0
    %685 = vmatmul.mubr.f32.gmra.mrb[0].mxu0 %v44
    %v686 = vpop.f32.mrb[0].mxu0
    %v687 = vadd.f32 0.0, %v686
    %v688 = vpop.f32.mrb[0].mxu0
    %689 = vmatprep.mubr.f32.mxu0 0.0
    %690 = vmatmul.mubr.f32.gmra.mrb[0].mxu0 %v45
    %v691 = vpop.f32.mrb[0].mxu0
    %v692 = vadd.f32 0.0, %v691
    %v693 = vpop.f32.mrb[0].mxu0
    %694 = vmatprep.mubr.f32.mxu0 0.0
    %695 = vmatmul.mubr.f32.gmra.mrb[0].mxu0 %v46
    %v696 = vpop.f32.mrb[0].mxu0
    %v697 = vadd.f32 0.0, %v696
    %v698 = vpop.f32.mrb[0].mxu0
    %699 = vmatprep.mubr.f32.mxu0 0.0
    %700 = vmatmul.mubr.f32.gmra.mrb[0].mxu0 %v47
    %v701 = vpop.f32.mrb[0].mxu0
    %v702 = vadd.f32 0.0, %v701
    %v703 = vpop.f32.mrb[0].mxu0
    %704 = vmatprep.mubr.f32.mxu0 0.0
    %705 = vmatmul.mubr.f32.gmra.mrb[0].mxu0 %v48
    %v706 = vpop.f32.mrb[0].mxu0
    %v707 = vadd.f32 0.0, %v706
    %v708 = vpop.f32.mrb[0].mxu0
    %709 = vmatprep.mubr.f32.mxu0 0.0
    %710 = vmatmul.mubr.f32.gmra.mrb[0].mxu0 %v49
    %v711 = vpop.f32.mrb[0].mxu0
    %v712 = vadd.f32 0.0, %v711
    %v713 = vpop.f32.mrb[0].mxu0
    %714 = vmatprep.mubr.f32.mxu0 0.0
    %715 = vmatmul.mubr.f32.gmra.mrb[0].mxu0 %v50
    %v716 = vpop.f32.mrb[0].mxu0
    %v717 = vadd.f32 0.0, %v716
    %v718 = vpop.f32.mrb[0].mxu0
    %719 = vmatprep.mubr.f32.mxu0 0.0
    %720 = vmatmul.mubr.f32.gmra.mrb[0].mxu0 %v51
    %v721 = vpop.f32.mrb[0].mxu0
    %v722 = vadd.f32 0.0, %v721
    %v723 = vpop.f32.mrb[0].mxu0
    %724 = vmatprep.mubr.f32.mxu0 0.0
    %725 = vmatmul.mubr.f32.gmra.mrb[0].mxu0 %v52
    %v726 = vpop.f32.mrb[0].mxu0
    %v727 = vadd.f32 0.0, %v726
    %v728 = vpop.f32.mrb[0].mxu0
    %729 = vmatprep.mubr.f32.mxu0 0.0
    %730 = vmatmul.mubr.f32.gmra.mrb[0].mxu0 %v53
    %v731 = vpop.f32.mrb[0].mxu0
    %v732 = vadd.f32 0.0, %v731
    %v733 = vpop.f32.mrb[0].mxu0
    %734 = vmatprep.mubr.f32.mxu0 0.0
    %735 = vmatmul.mubr.f32.gmra.mrb[0].mxu0 %v54
    %v736 = vpop.f32.mrb[0].mxu0
    %v737 = vadd.f32 0.0, %v736
    %v738 = vpop.f32.mrb[0].mxu0
    %739 = vmatprep.mubr.f32.mxu0 0.0
    %740 = vmatmul.mubr.f32.gmra.mrb[0].mxu0 %v55
    %v741 = vpop.f32.mrb[0].mxu0
    %v742 = vadd.f32 0.0, %v741
    %v743 = vpop.f32.mrb[0].mxu0
    %744 = vmatprep.mubr.f32.mxu0 0.0
    %745 = vmatmul.mubr.f32.gmra.mrb[0].mxu0 %v56
    %v746 = vpop.f32.mrb[0].mxu0
    %v747 = vadd.f32 0.0, %v746
    %v748 = vpop.f32.mrb[0].mxu0
    %749 = vdwg.mxu0
    %v750 = vld [vmem:[%s5] sm:$0xf]
    %vm751 = vcmask 31744
    %v753 = vsel %vm751, %v511, 0
    %v756 = vsel %vm751, %v516, 0
    %v759 = vsel %vm751, %v521, 0
    %v762 = vsel %vm751, %v526, 0
    %v765 = vsel %vm751, %v531, 0
    %v768 = vsel %vm751, %v536, 0
    %v771 = vsel %vm751, %v541, 0
    %v774 = vsel %vm751, %v546, 0
    %v777 = vsel %vm751, %v551, 0
    %v780 = vsel %vm751, %v556, 0
    %v783 = vsel %vm751, %v561, 0
    %v786 = vsel %vm751, %v566, 0
    %v789 = vsel %vm751, %v571, 0
    %v792 = vsel %vm751, %v576, 0
    %v795 = vsel %vm751, %v581, 0
    %v798 = vsel %vm751, %v586, 0
    %vm800 = vcmask 1043456
    %v802 = vsel %vm800, %v750, 0
    %804 = vmatprep.subr.mxu0 0.0
    %805 = vmatpush1.msra.mxu0 %v802
    %806 = vmatprep.subr.mxu0 0.0
    %807 = vmatpush1.msra.mxu0 0.0
    %808 = vmatprep.subr.mxu0 0.0
    %809 = vmatpush1.msra.mxu0 0.0
    %810 = vmatprep.subr.mxu0 0.0
    %811 = vmatpush1.msra.mxu0 0.0
    %812 = vmatprep.subr.mxu0 0.0
    %813 = vmatpush1.msra.mxu0 0.0
    %814 = vmatprep.subr.mxu0 0.0
    %815 = vmatpush1.msra.mxu0 0.0
    %816 = vmatprep.subr.mxu0 0.0
    %817 = vmatpush1.msra.mxu0 0.0
    %818 = vmatprep.subr.mxu0 0.0
    %819 = vmatpush1.msra.mxu0 0.0
    %820 = vmatprep.subr.mxu0 0.0
    %821 = vmatpush1.msra.mxu0 0.0
    %822 = vmatprep.subr.mxu0 0.0
    %823 = vmatpush1.msra.mxu0 0.0
    %824 = vmatprep.subr.mxu0 0.0
    %825 = vmatpush1.msra.mxu0 0.0
    %826 = vmatprep.subr.mxu0 0.0
    %827 = vmatpush1.msra.mxu0 0.0
    %828 = vmatprep.subr.mxu0 0.0
    %829 = vmatpush1.msra.mxu0 0.0
    %830 = vmatprep.subr.mxu0 0.0
    %831 = vmatpush1.msra.mxu0 0.0
    %832 = vmatprep.subr.mxu0 0.0
    %833 = vmatpush1.msra.mxu0 0.0
    %834 = vmatprep.subr.mxu0 0.0
    %835 = vmatpush1.msra.mxu0 0.0
    %836 = vmatprep.subr.mxu0 0.0
    %837 = vmatpush1.msra.mxu0 0.0
    %838 = vmatprep.subr.mxu0 0.0
    %839 = vmatpush1.msra.mxu0 0.0
    %840 = vmatprep.subr.mxu0 0.0
    %841 = vmatpush1.msra.mxu0 0.0
    %842 = vmatprep.subr.mxu0 0.0
    %843 = vmatpush1.msra.mxu0 0.0
    %844 = vmatprep.subr.mxu0 0.0
    %845 = vmatpush1.msra.mxu0 0.0
    %846 = vmatprep.subr.mxu0 0.0
    %847 = vmatpush1.msra.mxu0 0.0
    %848 = vmatprep.subr.mxu0 0.0
    %849 = vmatpush1.msra.mxu0 0.0
    %850 = vmatprep.subr.mxu0 0.0
    %851 = vmatpush1.msra.mxu0 0.0
    %852 = vmatprep.subr.mxu0 0.0
    %853 = vmatpush1.msra.mxu0 0.0
    %854 = vmatprep.subr.mxu0 0.0
    %855 = vmatpush1.msra.mxu0 0.0
    %856 = vmatprep.subr.mxu0 0.0
    %857 = vmatpush1.msra.mxu0 0.0
    %858 = vmatprep.subr.mxu0 0.0
    %859 = vmatpush1.msra.mxu0 0.0
    %860 = vmatprep.subr.mxu0 0.0
    %861 = vmatpush1.msra.mxu0 0.0
    %862 = vmatprep.subr.mxu0 0.0
    %863 = vmatpush1.msra.mxu0 0.0
    %864 = vmatprep.subr.mxu0 0.0
    %865 = vmatpush1.msra.mxu0 0.0
    %866 = vmatprep.subr.mxu0 0.0
    %867 = vmatpush1.msra.mxu0 0.0
    %868 = vmatprep.mubr.f32.mxu0 0.0
    %869 = vmatmul.mubr.f32.gmra.mrb[0].mxu0 %v753
    %v870 = vpop.f32.mrb[0].mxu0
    %v871 = vadd.f32 0.0, %v870
    %v872 = vpop.f32.mrb[0].mxu0
    %873 = vmatprep.mubr.f32.mxu0 0.0
    %874 = vmatmul.mubr.f32.gmra.mrb[0].mxu0 %v756
    %v875 = vpop.f32.mrb[0].mxu0
    %v876 = vadd.f32 0.0, %v875
    %v877 = vpop.f32.mrb[0].mxu0
    %878 = vmatprep.mubr.f32.mxu0 0.0
    %879 = vmatmul.mubr.f32.gmra.mrb[0].mxu0 %v759
    %v880 = vpop.f32.mrb[0].mxu0
    %v881 = vadd.f32 0.0, %v880
    %v882 = vpop.f32.mrb[0].mxu0
    %883 = vmatprep.mubr.f32.mxu0 0.0
    %884 = vmatmul.mubr.f32.gmra.mrb[0].mxu0 %v762
    %v885 = vpop.f32.mrb[0].mxu0
    %v886 = vadd.f32 0.0, %v885
    %v887 = vpop.f32.mrb[0].mxu0
    %888 = vmatprep.mubr.f32.mxu0 0.0
    %889 = vmatmul.mubr.f32.gmra.mrb[0].mxu0 %v765
    %v890 = vpop.f32.mrb[0].mxu0
    %v891 = vadd.f32 0.0, %v890
    %v892 = vpop.f32.mrb[0].mxu0
    %893 = vmatprep.mubr.f32.mxu0 0.0
    %894 = vmatmul.mubr.f32.gmra.mrb[0].mxu0 %v768
    %v895 = vpop.f32.mrb[0].mxu0
    %v896 = vadd.f32 0.0, %v895
    %v897 = vpop.f32.mrb[0].mxu0
    %898 = vmatprep.mubr.f32.mxu0 0.0
    %899 = vmatmul.mubr.f32.gmra.mrb[0].mxu0 %v771
    %v900 = vpop.f32.mrb[0].mxu0
    %v901 = vadd.f32 0.0, %v900
    %v902 = vpop.f32.mrb[0].mxu0
    %903 = vmatprep.mubr.f32.mxu0 0.0
    %904 = vmatmul.mubr.f32.gmra.mrb[0].mxu0 %v774
    %v905 = vpop.f32.mrb[0].mxu0
    %v906 = vadd.f32 0.0, %v905
    %v907 = vpop.f32.mrb[0].mxu0
    %908 = vmatprep.mubr.f32.mxu0 0.0
    %909 = vmatmul.mubr.f32.gmra.mrb[0].mxu0 %v777
    %v910 = vpop.f32.mrb[0].mxu0
    %v911 = vadd.f32 0.0, %v910
    %v912 = vpop.f32.mrb[0].mxu0
    %913 = vmatprep.mubr.f32.mxu0 0.0
    %914 = vmatmul.mubr.f32.gmra.mrb[0].mxu0 %v780
    %v915 = vpop.f32.mrb[0].mxu0
    %v916 = vadd.f32 0.0, %v915
    %v917 = vpop.f32.mrb[0].mxu0
    %918 = vmatprep.mubr.f32.mxu0 0.0
    %919 = vmatmul.mubr.f32.gmra.mrb[0].mxu0 %v783
    %v920 = vpop.f32.mrb[0].mxu0
    %v921 = vadd.f32 0.0, %v920
    %v922 = vpop.f32.mrb[0].mxu0
    %923 = vmatprep.mubr.f32.mxu0 0.0
    %924 = vmatmul.mubr.f32.gmra.mrb[0].mxu0 %v786
    %v925 = vpop.f32.mrb[0].mxu0
    %v926 = vadd.f32 0.0, %v925
    %v927 = vpop.f32.mrb[0].mxu0
    %928 = vmatprep.mubr.f32.mxu0 0.0
    %929 = vmatmul.mubr.f32.gmra.mrb[0].mxu0 %v789
    %v930 = vpop.f32.mrb[0].mxu0
    %v931 = vadd.f32 0.0, %v930
    %v932 = vpop.f32.mrb[0].mxu0
    %933 = vmatprep.mubr.f32.mxu0 0.0
    %934 = vmatmul.mubr.f32.gmra.mrb[0].mxu0 %v792
    %v935 = vpop.f32.mrb[0].mxu0
    %v936 = vadd.f32 0.0, %v935
    %v937 = vpop.f32.mrb[0].mxu0
    %938 = vmatprep.mubr.f32.mxu0 0.0
    %939 = vmatmul.mubr.f32.gmra.mrb[0].mxu0 %v795
    %v940 = vpop.f32.mrb[0].mxu0
    %v941 = vadd.f32 0.0, %v940
    %v942 = vpop.f32.mrb[0].mxu0
    %943 = vmatprep.mubr.f32.mxu0 0.0
    %944 = vmatmul.mubr.f32.gmra.mrb[0].mxu0 %v798
    %v945 = vpop.f32.mrb[0].mxu0
    %v946 = vadd.f32 0.0, %v945
    %v947 = vpop.f32.mrb[0].mxu0
    %948 = vdwg.mxu0
    %v949 = vld [vmem:[%s6] sm:$0xf]
    %v951 = vsel %vm751, %v672, 0
    %v954 = vsel %vm751, %v677, 0
    %v957 = vsel %vm751, %v682, 0
    %v960 = vsel %vm751, %v687, 0
    %v963 = vsel %vm751, %v692, 0
    %v966 = vsel %vm751, %v697, 0
    %v969 = vsel %vm751, %v702, 0
    %v972 = vsel %vm751, %v707, 0
    %v975 = vsel %vm751, %v712, 0
    %v978 = vsel %vm751, %v717, 0
    %v981 = vsel %vm751, %v722, 0
    %v984 = vsel %vm751, %v727, 0
    %v987 = vsel %vm751, %v732, 0
    %v990 = vsel %vm751, %v737, 0
    %v993 = vsel %vm751, %v742, 0
    %v996 = vsel %vm751, %v747, 0
    %v999 = vsel %vm800, %v949, 0
    %1001 = vmatprep.subr.mxu0 0.0
    %1002 = vmatpush1.msra.mxu0 %v999
    %1003 = vmatprep.subr.mxu0 0.0
    %1004 = vmatpush1.msra.mxu0 0.0
    %1005 = vmatprep.subr.mxu0 0.0
    %1006 = vmatpush1.msra.mxu0 0.0
    %1007 = vmatprep.subr.mxu0 0.0
    %1008 = vmatpush1.msra.mxu0 0.0
    %1009 = vmatprep.subr.mxu0 0.0
    %1010 = vmatpush1.msra.mxu0 0.0
    %1011 = vmatprep.subr.mxu0 0.0
    %1012 = vmatpush1.msra.mxu0 0.0
    %1013 = vmatprep.subr.mxu0 0.0
    %1014 = vmatpush1.msra.mxu0 0.0
    %1015 = vmatprep.subr.mxu0 0.0
    %1016 = vmatpush1.msra.mxu0 0.0
    %1017 = vmatprep.subr.mxu0 0.0
    %1018 = vmatpush1.msra.mxu0 0.0
    %1019 = vmatprep.subr.mxu0 0.0
    %1020 = vmatpush1.msra.mxu0 0.0
    %1021 = vmatprep.subr.mxu0 0.0
    %1022 = vmatpush1.msra.mxu0 0.0
    %1023 = vmatprep.subr.mxu0 0.0
    %1024 = vmatpush1.msra.mxu0 0.0
    %1025 = vmatprep.subr.mxu0 0.0
    %1026 = vmatpush1.msra.mxu0 0.0
    %1027 = vmatprep.subr.mxu0 0.0
    %1028 = vmatpush1.msra.mxu0 0.0
    %1029 = vmatprep.subr.mxu0 0.0
    %1030 = vmatpush1.msra.mxu0 0.0
    %1031 = vmatprep.subr.mxu0 0.0
    %1032 = vmatpush1.msra.mxu0 0.0
    %1033 = vmatprep.subr.mxu0 0.0
    %1034 = vmatpush1.msra.mxu0 0.0
    %1035 = vmatprep.subr.mxu0 0.0
    %1036 = vmatpush1.msra.mxu0 0.0
    %1037 = vmatprep.subr.mxu0 0.0
    %1038 = vmatpush1.msra.mxu0 0.0
    %1039 = vmatprep.subr.mxu0 0.0
    %1040 = vmatpush1.msra.mxu0 0.0
    %1041 = vmatprep.subr.mxu0 0.0
    %1042 = vmatpush1.msra.mxu0 0.0
    %1043 = vmatprep.subr.mxu0 0.0
    %1044 = vmatpush1.msra.mxu0 0.0
    %1045 = vmatprep.subr.mxu0 0.0
    %1046 = vmatpush1.msra.mxu0 0.0
    %1047 = vmatprep.subr.mxu0 0.0
    %1048 = vmatpush1.msra.mxu0 0.0
    %1049 = vmatprep.subr.mxu0 0.0
    %1050 = vmatpush1.msra.mxu0 0.0
    %1051 = vmatprep.subr.mxu0 0.0
    %1052 = vmatpush1.msra.mxu0 0.0
    %1053 = vmatprep.subr.mxu0 0.0
    %1054 = vmatpush1.msra.mxu0 0.0
    %1055 = vmatprep.subr.mxu0 0.0
    %1056 = vmatpush1.msra.mxu0 0.0
    %1057 = vmatprep.subr.mxu0 0.0
    %1058 = vmatpush1.msra.mxu0 0.0
    %1059 = vmatprep.subr.mxu0 0.0
    %1060 = vmatpush1.msra.mxu0 0.0
    %1061 = vmatprep.subr.mxu0 0.0
    %1062 = vmatpush1.msra.mxu0 0.0
    %1063 = vmatprep.subr.mxu0 0.0
    %1064 = vmatpush1.msra.mxu0 0.0
    %1065 = vmatprep.mubr.f32.mxu0 0.0
    %1066 = vmatmul.mubr.f32.gmra.mrb[0].mxu0 %v951
    %v1067 = vpop.f32.mrb[0].mxu0
    %v1068 = vadd.f32 0.0, %v1067
    %v1069 = vpop.f32.mrb[0].mxu0
    %1070 = vmatprep.mubr.f32.mxu0 0.0
    %1071 = vmatmul.mubr.f32.gmra.mrb[0].mxu0 %v954
    %v1072 = vpop.f32.mrb[0].mxu0
    %v1073 = vadd.f32 0.0, %v1072
    %v1074 = vpop.f32.mrb[0].mxu0
    %1075 = vmatprep.mubr.f32.mxu0 0.0
    %1076 = vmatmul.mubr.f32.gmra.mrb[0].mxu0 %v957
    %v1077 = vpop.f32.mrb[0].mxu0
    %v1078 = vadd.f32 0.0, %v1077
    %v1079 = vpop.f32.mrb[0].mxu0
    %1080 = vmatprep.mubr.f32.mxu0 0.0
    %1081 = vmatmul.mubr.f32.gmra.mrb[0].mxu0 %v960
    %v1082 = vpop.f32.mrb[0].mxu0
    %v1083 = vadd.f32 0.0, %v1082
    %v1084 = vpop.f32.mrb[0].mxu0
    %1085 = vmatprep.mubr.f32.mxu0 0.0
    %1086 = vmatmul.mubr.f32.gmra.mrb[0].mxu0 %v963
    %v1087 = vpop.f32.mrb[0].mxu0
    %v1088 = vadd.f32 0.0, %v1087
    %v1089 = vpop.f32.mrb[0].mxu0
    %1090 = vmatprep.mubr.f32.mxu0 0.0
    %1091 = vmatmul.mubr.f32.gmra.mrb[0].mxu0 %v966
    %v1092 = vpop.f32.mrb[0].mxu0
    %v1093 = vadd.f32 0.0, %v1092
    %v1094 = vpop.f32.mrb[0].mxu0
    %1095 = vmatprep.mubr.f32.mxu0 0.0
    %1096 = vmatmul.mubr.f32.gmra.mrb[0].mxu0 %v969
    %v1097 = vpop.f32.mrb[0].mxu0
    %v1098 = vadd.f32 0.0, %v1097
    %v1099 = vpop.f32.mrb[0].mxu0
    %1100 = vmatprep.mubr.f32.mxu0 0.0
    %1101 = vmatmul.mubr.f32.gmra.mrb[0].mxu0 %v972
    %v1102 = vpop.f32.mrb[0].mxu0
    %v1103 = vadd.f32 0.0, %v1102
    %v1104 = vpop.f32.mrb[0].mxu0
    %1105 = vmatprep.mubr.f32.mxu0 0.0
    %1106 = vmatmul.mubr.f32.gmra.mrb[0].mxu0 %v975
    %v1107 = vpop.f32.mrb[0].mxu0
    %v1108 = vadd.f32 0.0, %v1107
    %v1109 = vpop.f32.mrb[0].mxu0
    %1110 = vmatprep.mubr.f32.mxu0 0.0
    %1111 = vmatmul.mubr.f32.gmra.mrb[0].mxu0 %v978
    %v1112 = vpop.f32.mrb[0].mxu0
    %v1113 = vadd.f32 0.0, %v1112
    %v1114 = vpop.f32.mrb[0].mxu0
    %1115 = vmatprep.mubr.f32.mxu0 0.0
    %1116 = vmatmul.mubr.f32.gmra.mrb[0].mxu0 %v981
    %v1117 = vpop.f32.mrb[0].mxu0
    %v1118 = vadd.f32 0.0, %v1117
    %v1119 = vpop.f32.mrb[0].mxu0
    %1120 = vmatprep.mubr.f32.mxu0 0.0
    %1121 = vmatmul.mubr.f32.gmra.mrb[0].mxu0 %v984
    %v1122 = vpop.f32.mrb[0].mxu0
    %v1123 = vadd.f32 0.0, %v1122
    %v1124 = vpop.f32.mrb[0].mxu0
    %1125 = vmatprep.mubr.f32.mxu0 0.0
    %1126 = vmatmul.mubr.f32.gmra.mrb[0].mxu0 %v987
    %v1127 = vpop.f32.mrb[0].mxu0
    %v1128 = vadd.f32 0.0, %v1127
    %v1129 = vpop.f32.mrb[0].mxu0
    %1130 = vmatprep.mubr.f32.mxu0 0.0
    %1131 = vmatmul.mubr.f32.gmra.mrb[0].mxu0 %v990
    %v1132 = vpop.f32.mrb[0].mxu0
    %v1133 = vadd.f32 0.0, %v1132
    %v1134 = vpop.f32.mrb[0].mxu0
    %1135 = vmatprep.mubr.f32.mxu0 0.0
    %1136 = vmatmul.mubr.f32.gmra.mrb[0].mxu0 %v993
    %v1137 = vpop.f32.mrb[0].mxu0
    %v1138 = vadd.f32 0.0, %v1137
    %v1139 = vpop.f32.mrb[0].mxu0
    %1140 = vmatprep.mubr.f32.mxu0 0.0
    %1141 = vmatmul.mubr.f32.gmra.mrb[0].mxu0 %v996
    %v1142 = vpop.f32.mrb[0].mxu0
    %v1143 = vadd.f32 0.0, %v1142
    %v1144 = vpop.f32.mrb[0].mxu0
    %1145 = vdwg.mxu0
    %v1146 = vadd.f32 %v189, %v871
    %v1147 = vadd.f32 %v195, %v876
    %v1148 = vadd.f32 %v201, %v881
    %v1149 = vadd.f32 %v207, %v886
    %v1150 = vadd.f32 %v213, %v891
    %v1151 = vadd.f32 %v219, %v896
    %v1152 = vadd.f32 %v225, %v901
    %v1153 = vadd.f32 %v231, %v906
    %v1154 = vadd.f32 %v237, %v911
    %v1155 = vadd.f32 %v243, %v916
    %v1156 = vadd.f32 %v249, %v921
    %v1157 = vadd.f32 %v255, %v926
    %v1158 = vadd.f32 %v261, %v931
    %v1159 = vadd.f32 %v267, %v936
    %v1160 = vadd.f32 %v273, %v941
    %v1161 = vadd.f32 %v279, %v946
    %1162 = vst [vmem:[#allocation5] sm:$0xff] %v1146
    %1163 = vst [vmem:[#allocation5 + $0x18] sm:$0xff] %v1147
    %1164 = vst [vmem:[#allocation5 + $0x30] sm:$0xff] %v1148
    %1165 = vst [vmem:[#allocation5 + $0x48] sm:$0xff] %v1149
    %1166 = vst [vmem:[#allocation5 + $0x60] sm:$0xff] %v1150
    %1167 = vst [vmem:[#allocation5 + $0x78] sm:$0xff] %v1151
    %1168 = vst [vmem:[#allocation5 + $0x90] sm:$0xff] %v1152
    %1169 = vst [vmem:[#allocation5 + $0xa8] sm:$0xff] %v1153
    %1170 = vst [vmem:[#allocation5 + $0xc0] sm:$0xff] %v1154
    %1171 = vst [vmem:[#allocation5 + $0xd8] sm:$0xff] %v1155
    %1172 = vst [vmem:[#allocation5 + $0xf0] sm:$0xff] %v1156
    %1173 = vst [vmem:[#allocation5 + $0x108] sm:$0xff] %v1157
    %1174 = vst [vmem:[#allocation5 + $0x120] sm:$0xff] %v1158
    %1175 = vst [vmem:[#allocation5 + $0x138] sm:$0xff] %v1159
    %1176 = vst [vmem:[#allocation5 + $0x150] sm:$0xff] %v1160
    %1177 = vst [vmem:[#allocation5 + $0x168] sm:$0xff] %v1161
    %1178 = vst [vmem:[#allocation5 + $0x8] sm:$0xff] %v191
    %1179 = vst [vmem:[#allocation5 + $0x20] sm:$0xff] %v197
    %1180 = vst [vmem:[#allocation5 + $0x38] sm:$0xff] %v203
    %1181 = vst [vmem:[#allocation5 + $0x50] sm:$0xff] %v209
    %1182 = vst [vmem:[#allocation5 + $0x68] sm:$0xff] %v215
    %1183 = vst [vmem:[#allocation5 + $0x80] sm:$0xff] %v221
    %1184 = vst [vmem:[#allocation5 + $0x98] sm:$0xff] %v227
    %1185 = vst [vmem:[#allocation5 + $0xb0] sm:$0xff] %v233
    %1186 = vst [vmem:[#allocation5 + $0xc8] sm:$0xff] %v239
    %1187 = vst [vmem:[#allocation5 + $0xe0] sm:$0xff] %v245
    %1188 = vst [vmem:[#allocation5 + $0xf8] sm:$0xff] %v251
    %1189 = vst [vmem:[#allocation5 + $0x110] sm:$0xff] %v257
    %1190 = vst [vmem:[#allocation5 + $0x128] sm:$0xff] %v263
    %1191 = vst [vmem:[#allocation5 + $0x140] sm:$0xff] %v269
    %1192 = vst [vmem:[#allocation5 + $0x158] sm:$0xff] %v275
    %1193 = vst [vmem:[#allocation5 + $0x170] sm:$0xff] %v281
    %v1194 = vadd.f32 %v350, %v1068
    %v1195 = vadd.f32 %v355, %v1073
    %v1196 = vadd.f32 %v360, %v1078
    %v1197 = vadd.f32 %v365, %v1083
    %v1198 = vadd.f32 %v370, %v1088
    %v1199 = vadd.f32 %v375, %v1093
    %v1200 = vadd.f32 %v380, %v1098
    %v1201 = vadd.f32 %v385, %v1103
    %v1202 = vadd.f32 %v390, %v1108
    %v1203 = vadd.f32 %v395, %v1113
    %v1204 = vadd.f32 %v400, %v1118
    %v1205 = vadd.f32 %v405, %v1123
    %v1206 = vadd.f32 %v410, %v1128
    %v1207 = vadd.f32 %v415, %v1133
    %v1208 = vadd.f32 %v420, %v1138
    %v1209 = vadd.f32 %v425, %v1143
    %1210 = vst [vmem:[#allocation5 + $0x10] sm:$0xff] %v1194
    %1211 = vst [vmem:[#allocation5 + $0x28] sm:$0xff] %v1195
    %1212 = vst [vmem:[#allocation5 + $0x40] sm:$0xff] %v1196
    %1213 = vst [vmem:[#allocation5 + $0x58] sm:$0xff] %v1197
    %1214 = vst [vmem:[#allocation5 + $0x70] sm:$0xff] %v1198
    %1215 = vst [vmem:[#allocation5 + $0x88] sm:$0xff] %v1199
    %1216 = vst [vmem:[#allocation5 + $0xa0] sm:$0xff] %v1200
    %1217 = vst [vmem:[#allocation5 + $0xb8] sm:$0xff] %v1201
    %1218 = vst [vmem:[#allocation5 + $0xd0] sm:$0xff] %v1202
    %1219 = vst [vmem:[#allocation5 + $0xe8] sm:$0xff] %v1203
    %1220 = vst [vmem:[#allocation5 + $0x100] sm:$0xff] %v1204
    %1221 = vst [vmem:[#allocation5 + $0x118] sm:$0xff] %v1205
    %1222 = vst [vmem:[#allocation5 + $0x130] sm:$0xff] %v1206
    %1223 = vst [vmem:[#allocation5 + $0x148] sm:$0xff] %v1207
    %1224 = vst [vmem:[#allocation5 + $0x160] sm:$0xff] %v1208
    %1225 = vst [vmem:[#allocation5 + $0x178] sm:$0xff] %v1209
    // Predicated region
    $region34: #{tpu_custom_call.1} parent=1 // pred_check
      _
    $region35: #{tpu_custom_call.1} parent=1 // pred_check_branch
      %1227 = sbr.rel (0) target = $region37
    $region36: #{tpu_custom_call.1} parent=1 // pred_region
      %s1229 = ssub.s32 6144, 6144
      %1230 = vsyncadd [#allocation4], %s1229
      %s1231 = sshll.u32 [#allocation5], 4
      %s1232 = int_to_ptr.vmem [resolvable:$true] %s1231
      %1237 = dma.vmem_to_hbm [thread:$0]  %s1232, 6144, %s7, [#allocation4], 384, 384, 24
    $region37: #{tpu_custom_call.1} parent=1 // pred_fallthru
      _
    // Predicated region
    $region38: #{tpu_custom_call.1} parent=1 // pred_check
      _
    $region39: #{tpu_custom_call.1} parent=1 // pred_check_branch
      %1239 = sbr.rel (0) target = $region41
    $region40: #{tpu_custom_call.1} parent=1 // pred_region
      %1240 = dma.done [#allocation4], 6144
    $region41: #{tpu_custom_call.1} parent=1 // pred_fallthru
      _
    %1241 = vsyncpa [#allocation3], 1
    %1242 = vsyncpa [#allocation4], 1

</llo_original>
